<compile_context>
chip_gen: v7x
topology: tpu7x:2x2x1
jax: 0.10.0
libtpu: 0.0.40
codegen_flags: <defaults>
</compile_context>

<pallas_src>
import functools

import jax
import jax.numpy as jnp
from jax import lax
from jax.experimental import pallas as pl
from jax.experimental.pallas import tpu as pltpu

_LANE = 128
_SUBLANE = 8
_NEG = -1e30  # pad value for vocab columns: exp(pad - max) underflows to 0


def _gather_rows(idx_ref, table_ref, logits_ref, base, tile_rows, vocab):
    """logits_ref[r, :] = table[idx[base + r], :] for r in [0, tile_rows)."""
    for r in range(tile_rows):  # static unroll; tile_rows is small
        tok = jnp.clip(idx_ref[base + r], 0, vocab - 1)          # SMEM scalar read
        logits_ref[pl.ds(r, 1), :] = table_ref[pl.ds(tok, 1), :]  # dynamic row gather


def _embed_kernel(idx_ref, table_ref, logits_ref, *, tile_rows, vocab):
    """Embedding lookup only (targets=None path)."""
    base = pl.program_id(0) * tile_rows
    _gather_rows(idx_ref, table_ref, logits_ref, base, tile_rows, vocab)


def _embed_loss_kernel(idx_ref, tgt_ref, table_ref, logits_ref, loss_ref, *,
                       tile_rows, vocab, vocab_pad, n_rows):
    """Embedding lookup + mean cross-entropy, accumulated across the BT grid."""
    i = pl.program_id(0)
    base = i * tile_rows

    _gather_rows(idx_ref, table_ref, logits_ref, base, tile_rows, vocab)
    logits = logits_ref[...]                                    # (TM, Vp) f32

    # Build the target-id column vector from SMEM scalars (no second one-hot
    # of the full tile needed beyond a single compare below).
    row_iota = lax.broadcasted_iota(jnp.int32, (tile_rows, 1), 0)
    tgt_col = jnp.zeros((tile_rows, 1), jnp.int32)
    for r in range(tile_rows):
        tgt_col = tgt_col + jnp.where(row_iota == r, tgt_ref[base + r], 0)

    # cross_entropy_i = logsumexp(logits_i) - logits_i[target_i]
    m = jnp.max(logits, axis=-1, keepdims=True)                 # (TM, 1)
    lse = m + jnp.log(jnp.sum(jnp.exp(logits - m), axis=-1, keepdims=True))
    col = lax.broadcasted_iota(jnp.int32, (tile_rows, vocab_pad), 1)
    tgt_logit = jnp.sum(jnp.where(col == tgt_col, logits, 0.0),
                        axis=-1, keepdims=True)                 # (TM, 1)

    # Mask rows that are only BT padding, accumulate the per-tile sum.
    valid = (base + row_iota) < n_rows
    ce = jnp.where(valid, lse - tgt_logit, 0.0)
    tile_sum = jnp.sum(ce, axis=0, keepdims=True)               # (1, 1)

    @pl.when(i == 0)
    def _():
        loss_ref[...] = jnp.zeros_like(loss_ref)

    loss_ref[...] += tile_sum

    @pl.when(i == pl.num_programs(0) - 1)
    def _():
        loss_ref[...] = loss_ref[...] * (1.0 / n_rows)


def _pad_table(table):
    """Pad (V, V) table to (round8(V), round128(V)); pad cols get _NEG."""
    v = table.shape[0]
    vp = pl.cdiv(v, _LANE) * _LANE
    vr = pl.cdiv(v, _SUBLANE) * _SUBLANE
    padded = jnp.full((vr, vp), _NEG, dtype=jnp.float32)
    padded = padded.at[:v, :v].set(table.astype(jnp.float32))
    return padded, vr, vp


def bigram_forward(idx, table, targets=None, *, tile_rows=8):
    """JAX/Pallas equivalent of BigramLanguageModel.forward.

    Returns (logits, loss): logits (B, T, V) float32; loss None or scalar f32.
    """
    B, T = idx.shape
    V = table.shape[0]
    BT = B * T
    TM = tile_rows                       # rows per grid step (raise for big BT)
    n_tiles = pl.cdiv(BT, TM)
    BT_pad = n_tiles * TM

    table_p, Vr, Vp = _pad_table(table)
    idx_flat = jnp.zeros((BT_pad,), jnp.int32).at[:BT].set(
        idx.reshape(-1).astype(jnp.int32))

    table_spec = pl.BlockSpec((Vr, Vp), lambda i, *_: (0, 0))    # VMEM-resident
    logits_spec = pl.BlockSpec((TM, Vp), lambda i, *_: (i, 0))   # lane-dense out

    if targets is None:
        kernel = functools.partial(_embed_kernel, tile_rows=TM, vocab=V)
        logits_p = pl.pallas_call(
            kernel,
            out_shape=jax.ShapeDtypeStruct((BT_pad, Vp), jnp.float32),
            grid_spec=pltpu.PrefetchScalarGridSpec(
                num_scalar_prefetch=1,
                grid=(n_tiles,),
                in_specs=[table_spec],
                out_specs=logits_spec),
            compiler_params=pltpu.CompilerParams(
                dimension_semantics=("parallel",)),
        )(idx_flat, table_p)
        return logits_p[:BT, :V].reshape(B, T, V), None

    tgt_flat = jnp.zeros((BT_pad,), jnp.int32).at[:BT].set(
        targets.reshape(-1).astype(jnp.int32))
    kernel = functools.partial(_embed_loss_kernel, tile_rows=TM, vocab=V,
                               vocab_pad=Vp, n_rows=BT)
    logits_p, loss = pl.pallas_call(
        kernel,
        out_shape=(jax.ShapeDtypeStruct((BT_pad, Vp), jnp.float32),
                   jax.ShapeDtypeStruct((1, 1), jnp.float32)),
        grid_spec=pltpu.PrefetchScalarGridSpec(
            num_scalar_prefetch=2,
            grid=(n_tiles,),
            in_specs=[table_spec],
            out_specs=[logits_spec,
                       pl.BlockSpec((1, 1), lambda i, *_: (0, 0))]),
        # Loss output is a cross-step accumulator -> BT axis must be sequential.
        # TODO(synk): on v7x, shard the BT axis "parallel" across both TCs with
        # per-core partial sums and a final combine.
        compiler_params=pltpu.CompilerParams(
            dimension_semantics=("arbitrary",)),
    )(idx_flat, tgt_flat, table_p)
    return logits_p[:BT, :V].reshape(B, T, V), loss[0, 0]


if __name__ == "__main__":
    # Small, deterministic example: B=2, T=8, vocab_size=65 (tiny-shakespeare-ish).
    B, T, V = 2, 8, 65
    key = jax.random.PRNGKey(0)
    k_table, k_idx, k_tgt = jax.random.split(key, 3)

    # nn.Embedding default init: N(0, 1)
    table = jax.random.normal(k_table, (V, V), dtype=jnp.float32)
    idx = jax.random.randint(k_idx, (B, T), 0, V, dtype=jnp.int32)
    targets = jax.random.randint(k_tgt, (B, T), 0, V, dtype=jnp.int32)

    # Pallas forward (with targets -> logits + loss)
    logits, loss = bigram_forward(idx, table, targets)
    logits = jax.block_until_ready(logits)
    loss = jax.block_until_ready(loss)

    # Pallas forward (targets=None -> loss is None)
    logits_nl, loss_nl = bigram_forward(idx, table, None)
    logits_nl = jax.block_until_ready(logits_nl)
    assert loss_nl is None

    # Pure-JAX reference check.
    ref_logits = table[idx]                                   # (B, T, V)
    ref_flat = ref_logits.reshape(B * T, V)
    ref_lse = jax.scipy.special.logsumexp(ref_flat, axis=-1)
    ref_loss = jnp.mean(ref_lse - ref_flat[jnp.arange(B * T), targets.reshape(-1)])
    assert jnp.allclose(logits, ref_logits, atol=1e-5, rtol=1e-5)
    assert jnp.allclose(logits_nl, ref_logits, atol=1e-5, rtol=1e-5)
    assert jnp.allclose(loss, ref_loss, atol=1e-5, rtol=1e-5)

    # TODO(synk): `generate` is host-side autoregressive torch.multinomial
    # sampling in a Python loop, not a kernel hot path; not implemented here.
    print("KERNEL_OK")
</pallas_src>

<mosaic_0001>
module attributes {stable_mosaic.version = 11 : i64} {
  func.func @_embed_loss_kernel(%arg0: i32, %arg1: memref<16xi32, #tpu.memory_space<smem>>, %arg2: memref<16xi32, #tpu.memory_space<smem>>, %arg3: memref<72x128xf32, #tpu.memory_space<vmem>>, %arg4: memref<8x128xf32, #tpu.memory_space<vmem>>, %arg5: memref<1x1xf32, #tpu.memory_space<vmem>>) attributes {dimension_semantics = [#tpu.dimension_semantics<arbitrary>], iteration_bounds = array<i64: 2>, scalar_prefetch = 2 : i64, scratch_operands = 0 : i64, tpu.core_type = #tpu.core_type<tc>, window_params = [{pipeline_mode = #tpu.pipeline_mode<synchronous>, transform_indices = @transform_0, window_bounds = array<i64: 72, 128>}, {transform_indices = @transform_1, window_bounds = array<i64: 8, 128>}, {pipeline_mode = #tpu.pipeline_mode<synchronous>, transform_indices = @transform_2, window_bounds = array<i64: 1, 1>}]} {
    %c8_i32 = arith.constant 8 : i32
    %0 = arith.muli %arg0, %c8_i32 : i32
    %c0_i32 = arith.constant 0 : i32
    %1 = arith.addi %0, %c0_i32 : i32
    %2 = arith.index_cast %1 : i32 to index
    %3 = memref.load %arg1[%2] : memref<16xi32, #tpu.memory_space<smem>>
    %c0_i32_0 = arith.constant 0 : i32
    %c64_i32 = arith.constant 64 : i32
    %4 = arith.maxsi %c0_i32_0, %3 : i32
    %5 = arith.minsi %c64_i32, %4 : i32
    %6 = arith.index_cast %5 : i32 to index
    %c0 = arith.constant 0 : index
    %7 = vector.load %arg3[%6, %c0] : memref<72x128xf32, #tpu.memory_space<vmem>>, vector<1x128xf32>
    %c0_1 = arith.constant 0 : index
    %c0_2 = arith.constant 0 : index
    %8 = vector.load %arg4[%c0_1, %c0_2] : memref<8x128xf32, #tpu.memory_space<vmem>>, vector<1x128xf32>
    tpu.vector_store %arg4[%c0_1, %c0_2], %7 {strides = array<i32>} : memref<8x128xf32, #tpu.memory_space<vmem>>, vector<1x128xf32>,
    %c1_i32 = arith.constant 1 : i32
    %9 = arith.addi %0, %c1_i32 : i32
    %10 = arith.index_cast %9 : i32 to index
    %11 = memref.load %arg1[%10] : memref<16xi32, #tpu.memory_space<smem>>
    %c0_i32_3 = arith.constant 0 : i32
    %c64_i32_4 = arith.constant 64 : i32
    %12 = arith.maxsi %c0_i32_3, %11 : i32
    %13 = arith.minsi %c64_i32_4, %12 : i32
    %14 = arith.index_cast %13 : i32 to index
    %c0_5 = arith.constant 0 : index
    %15 = vector.load %arg3[%14, %c0_5] : memref<72x128xf32, #tpu.memory_space<vmem>>, vector<1x128xf32>
    %c1 = arith.constant 1 : index
    %c0_6 = arith.constant 0 : index
    %16 = vector.load %arg4[%c1, %c0_6] : memref<8x128xf32, #tpu.memory_space<vmem>>, vector<1x128xf32>
    tpu.vector_store %arg4[%c1, %c0_6], %15 {strides = array<i32>} : memref<8x128xf32, #tpu.memory_space<vmem>>, vector<1x128xf32>,
    %c2_i32 = arith.constant 2 : i32
    %17 = arith.addi %0, %c2_i32 : i32
    %18 = arith.index_cast %17 : i32 to index
    %19 = memref.load %arg1[%18] : memref<16xi32, #tpu.memory_space<smem>>
    %c0_i32_7 = arith.constant 0 : i32
    %c64_i32_8 = arith.constant 64 : i32
    %20 = arith.maxsi %c0_i32_7, %19 : i32
    %21 = arith.minsi %c64_i32_8, %20 : i32
    %22 = arith.index_cast %21 : i32 to index
    %c0_9 = arith.constant 0 : index
    %23 = vector.load %arg3[%22, %c0_9] : memref<72x128xf32, #tpu.memory_space<vmem>>, vector<1x128xf32>
    %c2 = arith.constant 2 : index
    %c0_10 = arith.constant 0 : index
    %24 = vector.load %arg4[%c2, %c0_10] : memref<8x128xf32, #tpu.memory_space<vmem>>, vector<1x128xf32>
    tpu.vector_store %arg4[%c2, %c0_10], %23 {strides = array<i32>} : memref<8x128xf32, #tpu.memory_space<vmem>>, vector<1x128xf32>,
    %c3_i32 = arith.constant 3 : i32
    %25 = arith.addi %0, %c3_i32 : i32
    %26 = arith.index_cast %25 : i32 to index
    %27 = memref.load %arg1[%26] : memref<16xi32, #tpu.memory_space<smem>>
    %c0_i32_11 = arith.constant 0 : i32
    %c64_i32_12 = arith.constant 64 : i32
    %28 = arith.maxsi %c0_i32_11, %27 : i32
    %29 = arith.minsi %c64_i32_12, %28 : i32
    %30 = arith.index_cast %29 : i32 to index
    %c0_13 = arith.constant 0 : index
    %31 = vector.load %arg3[%30, %c0_13] : memref<72x128xf32, #tpu.memory_space<vmem>>, vector<1x128xf32>
    %c3 = arith.constant 3 : index
    %c0_14 = arith.constant 0 : index
    %32 = vector.load %arg4[%c3, %c0_14] : memref<8x128xf32, #tpu.memory_space<vmem>>, vector<1x128xf32>
    tpu.vector_store %arg4[%c3, %c0_14], %31 {strides = array<i32>} : memref<8x128xf32, #tpu.memory_space<vmem>>, vector<1x128xf32>,
    %c4_i32 = arith.constant 4 : i32
    %33 = arith.addi %0, %c4_i32 : i32
    %34 = arith.index_cast %33 : i32 to index
    %35 = memref.load %arg1[%34] : memref<16xi32, #tpu.memory_space<smem>>
    %c0_i32_15 = arith.constant 0 : i32
    %c64_i32_16 = arith.constant 64 : i32
    %36 = arith.maxsi %c0_i32_15, %35 : i32
    %37 = arith.minsi %c64_i32_16, %36 : i32
    %38 = arith.index_cast %37 : i32 to index
    %c0_17 = arith.constant 0 : index
    %39 = vector.load %arg3[%38, %c0_17] : memref<72x128xf32, #tpu.memory_space<vmem>>, vector<1x128xf32>
    %c4 = arith.constant 4 : index
    %c0_18 = arith.constant 0 : index
    %40 = vector.load %arg4[%c4, %c0_18] : memref<8x128xf32, #tpu.memory_space<vmem>>, vector<1x128xf32>
    tpu.vector_store %arg4[%c4, %c0_18], %39 {strides = array<i32>} : memref<8x128xf32, #tpu.memory_space<vmem>>, vector<1x128xf32>,
    %c5_i32 = arith.constant 5 : i32
    %41 = arith.addi %0, %c5_i32 : i32
    %42 = arith.index_cast %41 : i32 to index
    %43 = memref.load %arg1[%42] : memref<16xi32, #tpu.memory_space<smem>>
    %c0_i32_19 = arith.constant 0 : i32
    %c64_i32_20 = arith.constant 64 : i32
    %44 = arith.maxsi %c0_i32_19, %43 : i32
    %45 = arith.minsi %c64_i32_20, %44 : i32
    %46 = arith.index_cast %45 : i32 to index
    %c0_21 = arith.constant 0 : index
    %47 = vector.load %arg3[%46, %c0_21] : memref<72x128xf32, #tpu.memory_space<vmem>>, vector<1x128xf32>
    %c5 = arith.constant 5 : index
    %c0_22 = arith.constant 0 : index
    %48 = vector.load %arg4[%c5, %c0_22] : memref<8x128xf32, #tpu.memory_space<vmem>>, vector<1x128xf32>
    tpu.vector_store %arg4[%c5, %c0_22], %47 {strides = array<i32>} : memref<8x128xf32, #tpu.memory_space<vmem>>, vector<1x128xf32>,
    %c6_i32 = arith.constant 6 : i32
    %49 = arith.addi %0, %c6_i32 : i32
    %50 = arith.index_cast %49 : i32 to index
    %51 = memref.load %arg1[%50] : memref<16xi32, #tpu.memory_space<smem>>
    %c0_i32_23 = arith.constant 0 : i32
    %c64_i32_24 = arith.constant 64 : i32
    %52 = arith.maxsi %c0_i32_23, %51 : i32
    %53 = arith.minsi %c64_i32_24, %52 : i32
    %54 = arith.index_cast %53 : i32 to index
    %c0_25 = arith.constant 0 : index
    %55 = vector.load %arg3[%54, %c0_25] : memref<72x128xf32, #tpu.memory_space<vmem>>, vector<1x128xf32>
    %c6 = arith.constant 6 : index
    %c0_26 = arith.constant 0 : index
    %56 = vector.load %arg4[%c6, %c0_26] : memref<8x128xf32, #tpu.memory_space<vmem>>, vector<1x128xf32>
    tpu.vector_store %arg4[%c6, %c0_26], %55 {strides = array<i32>} : memref<8x128xf32, #tpu.memory_space<vmem>>, vector<1x128xf32>,
    %c7_i32 = arith.constant 7 : i32
    %57 = arith.addi %0, %c7_i32 : i32
    %58 = arith.index_cast %57 : i32 to index
    %59 = memref.load %arg1[%58] : memref<16xi32, #tpu.memory_space<smem>>
    %c0_i32_27 = arith.constant 0 : i32
    %c64_i32_28 = arith.constant 64 : i32
    %60 = arith.maxsi %c0_i32_27, %59 : i32
    %61 = arith.minsi %c64_i32_28, %60 : i32
    %62 = arith.index_cast %61 : i32 to index
    %c0_29 = arith.constant 0 : index
    %63 = vector.load %arg3[%62, %c0_29] : memref<72x128xf32, #tpu.memory_space<vmem>>, vector<1x128xf32>
    %c7 = arith.constant 7 : index
    %c0_30 = arith.constant 0 : index
    %64 = vector.load %arg4[%c7, %c0_30] : memref<8x128xf32, #tpu.memory_space<vmem>>, vector<1x128xf32>
    tpu.vector_store %arg4[%c7, %c0_30], %63 {strides = array<i32>} : memref<8x128xf32, #tpu.memory_space<vmem>>, vector<1x128xf32>,
    %c0_31 = arith.constant 0 : index
    %c0_32 = arith.constant 0 : index
    %65 = vector.load %arg4[%c0_31, %c0_32] : memref<8x128xf32, #tpu.memory_space<vmem>>, vector<8x128xf32>
    %66 = tpu.iota {dimensions = array<i32: 0>} : vector<8x1xi32>
    %c0_i32_33 = arith.constant 0 : i32
    %67 = vector.broadcast %c0_i32_33 : i32 to vector<8x1xi32>
    %c0_i32_34 = arith.constant 0 : i32
    %68 = vector.broadcast %c0_i32_34 : i32 to vector<8x1xi32>
    %69 = arith.cmpi eq, %66, %68 : vector<8x1xi32>
    %c0_i32_35 = arith.constant 0 : i32
    %70 = arith.addi %0, %c0_i32_35 : i32
    %71 = arith.index_cast %70 : i32 to index
    %72 = memref.load %arg2[%71] : memref<16xi32, #tpu.memory_space<smem>>
    %c0_i32_36 = arith.constant 0 : i32
    %73 = vector.broadcast %72 : i32 to vector<8x1xi32>
    %74 = vector.broadcast %c0_i32_36 : i32 to vector<8x1xi32>
    %75 = arith.select %69, %73, %74 : vector<8x1xi1>, vector<8x1xi32>
    %76 = arith.addi %67, %75 : vector<8x1xi32>
    %c1_i32_37 = arith.constant 1 : i32
    %77 = vector.broadcast %c1_i32_37 : i32 to vector<8x1xi32>
    %78 = arith.cmpi eq, %66, %77 : vector<8x1xi32>
    %c1_i32_38 = arith.constant 1 : i32
    %79 = arith.addi %0, %c1_i32_38 : i32
    %80 = arith.index_cast %79 : i32 to index
    %81 = memref.load %arg2[%80] : memref<16xi32, #tpu.memory_space<smem>>
    %c0_i32_39 = arith.constant 0 : i32
    %82 = vector.broadcast %81 : i32 to vector<8x1xi32>
    %83 = vector.broadcast %c0_i32_39 : i32 to vector<8x1xi32>
    %84 = arith.select %78, %82, %83 : vector<8x1xi1>, vector<8x1xi32>
    %85 = arith.addi %76, %84 : vector<8x1xi32>
    %c2_i32_40 = arith.constant 2 : i32
    %86 = vector.broadcast %c2_i32_40 : i32 to vector<8x1xi32>
    %87 = arith.cmpi eq, %66, %86 : vector<8x1xi32>
    %c2_i32_41 = arith.constant 2 : i32
    %88 = arith.addi %0, %c2_i32_41 : i32
    %89 = arith.index_cast %88 : i32 to index
    %90 = memref.load %arg2[%89] : memref<16xi32, #tpu.memory_space<smem>>
    %c0_i32_42 = arith.constant 0 : i32
    %91 = vector.broadcast %90 : i32 to vector<8x1xi32>
    %92 = vector.broadcast %c0_i32_42 : i32 to vector<8x1xi32>
    %93 = arith.select %87, %91, %92 : vector<8x1xi1>, vector<8x1xi32>
    %94 = arith.addi %85, %93 : vector<8x1xi32>
    %c3_i32_43 = arith.constant 3 : i32
    %95 = vector.broadcast %c3_i32_43 : i32 to vector<8x1xi32>
    %96 = arith.cmpi eq, %66, %95 : vector<8x1xi32>
    %c3_i32_44 = arith.constant 3 : i32
    %97 = arith.addi %0, %c3_i32_44 : i32
    %98 = arith.index_cast %97 : i32 to index
    %99 = memref.load %arg2[%98] : memref<16xi32, #tpu.memory_space<smem>>
    %c0_i32_45 = arith.constant 0 : i32
    %100 = vector.broadcast %99 : i32 to vector<8x1xi32>
    %101 = vector.broadcast %c0_i32_45 : i32 to vector<8x1xi32>
    %102 = arith.select %96, %100, %101 : vector<8x1xi1>, vector<8x1xi32>
    %103 = arith.addi %94, %102 : vector<8x1xi32>
    %c4_i32_46 = arith.constant 4 : i32
    %104 = vector.broadcast %c4_i32_46 : i32 to vector<8x1xi32>
    %105 = arith.cmpi eq, %66, %104 : vector<8x1xi32>
    %c4_i32_47 = arith.constant 4 : i32
    %106 = arith.addi %0, %c4_i32_47 : i32
    %107 = arith.index_cast %106 : i32 to index
    %108 = memref.load %arg2[%107] : memref<16xi32, #tpu.memory_space<smem>>
    %c0_i32_48 = arith.constant 0 : i32
    %109 = vector.broadcast %108 : i32 to vector<8x1xi32>
    %110 = vector.broadcast %c0_i32_48 : i32 to vector<8x1xi32>
    %111 = arith.select %105, %109, %110 : vector<8x1xi1>, vector<8x1xi32>
    %112 = arith.addi %103, %111 : vector<8x1xi32>
    %c5_i32_49 = arith.constant 5 : i32
    %113 = vector.broadcast %c5_i32_49 : i32 to vector<8x1xi32>
    %114 = arith.cmpi eq, %66, %113 : vector<8x1xi32>
    %c5_i32_50 = arith.constant 5 : i32
    %115 = arith.addi %0, %c5_i32_50 : i32
    %116 = arith.index_cast %115 : i32 to index
    %117 = memref.load %arg2[%116] : memref<16xi32, #tpu.memory_space<smem>>
    %c0_i32_51 = arith.constant 0 : i32
    %118 = vector.broadcast %117 : i32 to vector<8x1xi32>
    %119 = vector.broadcast %c0_i32_51 : i32 to vector<8x1xi32>
    %120 = arith.select %114, %118, %119 : vector<8x1xi1>, vector<8x1xi32>
    %121 = arith.addi %112, %120 : vector<8x1xi32>
    %c6_i32_52 = arith.constant 6 : i32
    %122 = vector.broadcast %c6_i32_52 : i32 to vector<8x1xi32>
    %123 = arith.cmpi eq, %66, %122 : vector<8x1xi32>
    %c6_i32_53 = arith.constant 6 : i32
    %124 = arith.addi %0, %c6_i32_53 : i32
    %125 = arith.index_cast %124 : i32 to index
    %126 = memref.load %arg2[%125] : memref<16xi32, #tpu.memory_space<smem>>
    %c0_i32_54 = arith.constant 0 : i32
    %127 = vector.broadcast %126 : i32 to vector<8x1xi32>
    %128 = vector.broadcast %c0_i32_54 : i32 to vector<8x1xi32>
    %129 = arith.select %123, %127, %128 : vector<8x1xi1>, vector<8x1xi32>
    %130 = arith.addi %121, %129 : vector<8x1xi32>
    %c7_i32_55 = arith.constant 7 : i32
    %131 = vector.broadcast %c7_i32_55 : i32 to vector<8x1xi32>
    %132 = arith.cmpi eq, %66, %131 : vector<8x1xi32>
    %c7_i32_56 = arith.constant 7 : i32
    %133 = arith.addi %0, %c7_i32_56 : i32
    %134 = arith.index_cast %133 : i32 to index
    %135 = memref.load %arg2[%134] : memref<16xi32, #tpu.memory_space<smem>>
    %c0_i32_57 = arith.constant 0 : i32
    %136 = vector.broadcast %135 : i32 to vector<8x1xi32>
    %137 = vector.broadcast %c0_i32_57 : i32 to vector<8x1xi32>
    %138 = arith.select %132, %136, %137 : vector<8x1xi1>, vector<8x1xi32>
    %139 = arith.addi %130, %138 : vector<8x1xi32>
    %cst = arith.constant dense<0xFF800000> : vector<8xf32>
    %140 = vector.multi_reduction <maximumf>, %65, %cst [1] : vector<8x128xf32> to vector<8xf32>
    %141 = vector.shape_cast %140 : vector<8xf32> to vector<8x1xf32>
    %142 = vector.broadcast %141 : vector<8x1xf32> to vector<8x128xf32>
    %143 = arith.subf %65, %142 : vector<8x128xf32>
    %144 = math.exp %143 : vector<8x128xf32>
    %cst_58 = arith.constant dense<0.000000e+00> : vector<8xf32>
    %145 = vector.multi_reduction <add>, %144, %cst_58 [1] : vector<8x128xf32> to vector<8xf32>
    %146 = vector.shape_cast %145 : vector<8xf32> to vector<8x1xf32>
    %147 = math.log %146 : vector<8x1xf32>
    %148 = arith.addf %141, %147 : vector<8x1xf32>
    %149 = tpu.iota {dimensions = array<i32: 1>} : vector<8x128xi32>
    %150 = vector.broadcast %139 : vector<8x1xi32> to vector<8x128xi32>
    %151 = arith.cmpi eq, %149, %150 : vector<8x128xi32>
    %cst_59 = arith.constant 0.000000e+00 : f32
    %152 = vector.broadcast %cst_59 : f32 to vector<8x128xf32>
    %153 = arith.select %151, %65, %152 : vector<8x128xi1>, vector<8x128xf32>
    %cst_60 = arith.constant dense<0.000000e+00> : vector<8xf32>
    %154 = vector.multi_reduction <add>, %153, %cst_60 [1] : vector<8x128xf32> to vector<8xf32>
    %155 = vector.shape_cast %154 : vector<8xf32> to vector<8x1xf32>
    %156 = vector.broadcast %0 : i32 to vector<8x1xi32>
    %157 = arith.addi %156, %66 : vector<8x1xi32>
    %c16_i32 = arith.constant 16 : i32
    %158 = vector.broadcast %c16_i32 : i32 to vector<8x1xi32>
    %159 = arith.cmpi slt, %157, %158 : vector<8x1xi32>
    %160 = arith.subf %148, %155 : vector<8x1xf32>
    %cst_61 = arith.constant 0.000000e+00 : f32
    %161 = vector.broadcast %cst_61 : f32 to vector<8x1xf32>
    %162 = arith.select %159, %160, %161 : vector<8x1xi1>, vector<8x1xf32>
    %cst_62 = arith.constant dense<0.000000e+00> : vector<1xf32>
    %163 = vector.multi_reduction <add>, %162, %cst_62 [0] : vector<8x1xf32> to vector<1xf32>
    %164 = vector.shape_cast %163 : vector<1xf32> to vector<1x1xf32>
    %c0_i32_63 = arith.constant 0 : i32
    %165 = arith.cmpi eq, %arg0, %c0_i32_63 : i32
    %166 = arith.extui %165 : i1 to i32
    %c0_i32_64 = arith.constant 0 : i32
    %167 = arith.cmpi ne, %166, %c0_i32_64 : i32
    scf.if %167 {
      %cst_71 = arith.constant 0.000000e+00 : f32
      %174 = vector.broadcast %cst_71 : f32 to vector<1x1xf32>
      %c0_72 = arith.constant 0 : index
      %c0_73 = arith.constant 0 : index
      %175 = vector.load %arg5[%c0_72, %c0_73] : memref<1x1xf32, #tpu.memory_space<vmem>>, vector<1x1xf32>
      tpu.vector_store %arg5[%c0_72, %c0_73], %174 {strides = array<i32>} : memref<1x1xf32, #tpu.memory_space<vmem>>, vector<1x1xf32>,
    } else {
    }
    %c0_65 = arith.constant 0 : index
    %c0_66 = arith.constant 0 : index
    %168 = vector.load %arg5[%c0_65, %c0_66] : memref<1x1xf32, #tpu.memory_space<vmem>>, vector<1x1xf32>
    %169 = arith.addf %168, %164 : vector<1x1xf32>
    %c0_67 = arith.constant 0 : index
    %c0_68 = arith.constant 0 : index
    %170 = vector.load %arg5[%c0_67, %c0_68] : memref<1x1xf32, #tpu.memory_space<vmem>>, vector<1x1xf32>
    tpu.vector_store %arg5[%c0_67, %c0_68], %169 {strides = array<i32>} : memref<1x1xf32, #tpu.memory_space<vmem>>, vector<1x1xf32>,
    %c1_i32_69 = arith.constant 1 : i32
    %171 = arith.cmpi eq, %arg0, %c1_i32_69 : i32
    %172 = arith.extui %171 : i1 to i32
    %c0_i32_70 = arith.constant 0 : i32
    %173 = arith.cmpi ne, %172, %c0_i32_70 : i32
    scf.if %173 {
      %c0_71 = arith.constant 0 : index
      %c0_72 = arith.constant 0 : index
      %174 = vector.load %arg5[%c0_71, %c0_72] : memref<1x1xf32, #tpu.memory_space<vmem>>, vector<1x1xf32>
      %cst_73 = arith.constant 6.250000e-02 : f32
      %175 = vector.broadcast %cst_73 : f32 to vector<1x1xf32>
      %176 = arith.mulf %174, %175 : vector<1x1xf32>
      %c0_74 = arith.constant 0 : index
      %c0_75 = arith.constant 0 : index
      %177 = vector.load %arg5[%c0_74, %c0_75] : memref<1x1xf32, #tpu.memory_space<vmem>>, vector<1x1xf32>
      tpu.vector_store %arg5[%c0_74, %c0_75], %176 {strides = array<i32>} : memref<1x1xf32, #tpu.memory_space<vmem>>, vector<1x1xf32>,
    } else {
    }
    return
  }
  func.func @transform_0(%arg0: i32, %arg1: memref<16xi32, #tpu.memory_space<smem>>, %arg2: memref<16xi32, #tpu.memory_space<smem>>) -> (i32, i32) {
    %c0_i32 = arith.constant 0 : i32
    %c0_i32_0 = arith.constant 0 : i32
    %c0_i32_1 = arith.constant 0 : i32
    return %c0_i32, %c0_i32_0 : i32, i32
  }
  func.func @transform_1(%arg0: i32, %arg1: memref<16xi32, #tpu.memory_space<smem>>, %arg2: memref<16xi32, #tpu.memory_space<smem>>) -> (i32, i32) {
    %c0_i32 = arith.constant 0 : i32
    %c0_i32_0 = arith.constant 0 : i32
    return %arg0, %c0_i32 : i32, i32
  }
  func.func @transform_2(%arg0: i32, %arg1: memref<16xi32, #tpu.memory_space<smem>>, %arg2: memref<16xi32, #tpu.memory_space<smem>>) -> (i32, i32) {
    %c0_i32 = arith.constant 0 : i32
    %c0_i32_0 = arith.constant 0 : i32
    %c0_i32_1 = arith.constant 0 : i32
    return %c0_i32, %c0_i32_0 : i32, i32
  }
}

</mosaic_0001>

<llo_original>
// kernel: tpu_custom_call.1
$region0: #{tpu_custom_call.1}
  #allocation0 [shape = 'u32[]', space=smem, size = 0x4, offset = 0x4, fixed_abs, tag = 'smem constant byte address 0x4 - core index']
  #allocation1 [shape = 'u32[144,128]{1,0:T(1,128)}', space=vmem, size = 0x12000, scoped, tag = 'internal scratch']
  #allocation2 [shape = 's32[1]{0}', space=sflag, size = 0x4, scoped, tag = 'scoped memory for tpu_custom_call.1']
  #allocation3 [shape = 'u8[512]{0}', space=smem, size = 0x200, scoped, tag = 'prefetched SMEM operand 0']
  #allocation4 [shape = 'u8[512]{0}', space=smem, size = 0x200, scoped, tag = 'prefetched SMEM operand 1']
  %s0 = inlined_call_operand.hbm [shape: s32[16], index: 0, kind: input, shape index: {}]
  %s1 = inlined_call_operand.vmem [shape: s32[16], index: 1, kind: input, shape index: {}]
  %s2 = inlined_call_operand.hbm [shape: f32[72,128], index: 2, kind: input, shape index: {}]
  %s3 = inlined_call_operand.hbm [shape: f32[16,128], index: 3, kind: output, shape index: {0}]
  %s4 = inlined_call_operand.hbm [shape: f32[1,1], index: 4, kind: output, shape index: {1}]
  %5 = xla_tuple %s3, %s4
  %s6 = sld [smem:[#allocation0]]
  $region57: #{tpu_custom_call.1} parent=0
    _
  %s8 = ssub.s32 1, %s6
  %s9 = scalar_select 0, %s8, %s6
  %11 = dma.hbm_to_smem %s0, 16, [#allocation3], [#allocation2]
  %s12 = sshll.u32 %s1, 4
  %s13 = int_to_ptr.vmem [resolvable:$true] %s12
  %15 = dma.vmem_to_smem %s13, 16, [#allocation4], [#allocation2]
  %16 = dma.done [#allocation2], 32
  %17 = sfence
  $region1: #{tpu_custom_call.1} parent=0
    #allocation5 [shape = 'u8[36864]{0}', space=vmem, size = 0x9000, scoped, tag = 'input window, operand 2, single buffered']
    #allocation6 [shape = 's32[2]{0}', space=sflag, size = 0x8, scoped, tag = 'scoped memory for tpu_custom_call.1']
    #allocation7 [shape = 's32[2]{0}', space=sflag, size = 0x8, scoped, tag = 'scoped memory for tpu_custom_call.1']
    #allocation8 [shape = 'u8[8192]{0}', space=vmem, size = 0x2000, scoped, tag = 'output window, operand 0']
    #allocation9 [shape = 'u8[512]{0}', space=vmem, size = 0x400, scoped, tag = 'output window, operand 1, single buffered']
    #allocation10 [shape = 's32[1]{0}', space=sflag, size = 0x4, scoped, tag = 'scoped memory for tpu_custom_call.1']
    %18 = vsyncpa [#allocation6], 0
    %19 = vsyncpa [#allocation7], 0
    %s20 = scalar_lea.sflag [#allocation7], 1
    %21 = vsyncpa %s20, 0
    %22 = vsyncpa [#allocation10], 0
    loop: start=0, step=1, limit=4
    $region2: #{tpu_custom_call.1} parent=1 // loop_pre_header
      _
    $region3: #{tpu_custom_call.1} parent=1 // loop_header
      %s24 = sphi 0, %s28
      %p25 = scmp.ge.s32.totalorder %s24, 4
      %s32 = sphi 0, %s32
      %s34 = sphi 0, %s32
      %s35 = sphi 0, %s34
      %s49 = sphi 0, %s35
      %s55 = sphi 0, %s57
      %s58 = sphi 0, %s55
      %s59 = sphi 0, %s58
      %s75 = sphi 0, %s59
      %s79 = sphi 0, %s79
      %s81 = sphi 0, %s79
      %s82 = sphi 0, %s81
      %s96 = sphi 0, %s82
    $region4: #{tpu_custom_call.1} parent=1 // loop_header_branch
      %27 = sbr.rel (%p25) target = $region8
    $region5: #{tpu_custom_call.1} parent=1 // loop_body
      %s29 = ssub.s32 %s24, 1
      %s30 = ssub.s32 %s24, 2
      %s31 = sadd.s32 %s24, 1
      %s33 = sadd.s32 %s32, 1
      %p36 = scmp.eq.s32.totalorder %s24, 1
      %p37 = scmp.ne.s32.totalorder %s32, %s34
      %p38 = scmp.eq.s32.totalorder %s24, 0
      %p39 = por %p37, %p38
      %p40 = scmp.ne.s32.totalorder %s32, %s34
      %p41 = scmp.eq.s32.totalorder %s29, 1
      %p42 = por %p40, %p41
      %p43 = scmp.ne.s32.totalorder %s34, %s35
      %p44 = scmp.eq.s32.totalorder %s29, 0
      %p45 = por %p43, %p44
      %p46 = scmp.ne.s32.totalorder %s34, %s35
      %p47 = scmp.eq.s32.totalorder %s30, 1
      %p48 = por %p46, %p47
      %p50 = scmp.ne.s32.totalorder %s35, %s49
      %p51 = scmp.eq.s32.totalorder %s30, 0
      %p52 = por %p50, %p51
      %s53 = ssub.s32 %s24, %s31
      %p54 = scmp.eq.s32.totalorder %s53, 0
      %s56 = sadd.s32 %s55, 1
      %s57 = scalar_select %p54, %s55, %s56
      %p60 = pneg %p54
      %p61 = scmp.eq.s32.totalorder %s24, 1
      %p62 = por %p60, %p61
      %p63 = scmp.ne.s32.totalorder %s55, %s58
      %p64 = scmp.eq.s32.totalorder %s24, 0
      %p65 = por %p63, %p64
      %p66 = scmp.ne.s32.totalorder %s55, %s58
      %p67 = scmp.eq.s32.totalorder %s29, 1
      %p68 = por %p66, %p67
      %p69 = scmp.ne.s32.totalorder %s58, %s59
      %p70 = scmp.eq.s32.totalorder %s29, 0
      %p71 = por %p69, %p70
      %p72 = scmp.ne.s32.totalorder %s58, %s59
      %p73 = scmp.eq.s32.totalorder %s30, 1
      %p74 = por %p72, %p73
      %p76 = scmp.ne.s32.totalorder %s59, %s75
      %p77 = scmp.eq.s32.totalorder %s30, 0
      %p78 = por %p76, %p77
      %s80 = sadd.s32 %s79, 1
      %p83 = scmp.eq.s32.totalorder %s24, 1
      %p84 = scmp.ne.s32.totalorder %s79, %s81
      %p85 = scmp.eq.s32.totalorder %s24, 0
      %p86 = por %p84, %p85
      %p87 = scmp.ne.s32.totalorder %s79, %s81
      %p88 = scmp.eq.s32.totalorder %s29, 1
      %p89 = por %p87, %p88
      %p90 = scmp.ne.s32.totalorder %s81, %s82
      %p91 = scmp.eq.s32.totalorder %s29, 0
      %p92 = por %p90, %p91
      %p93 = scmp.ne.s32.totalorder %s81, %s82
      %p94 = scmp.eq.s32.totalorder %s30, 1
      %p95 = por %p93, %p94
      %p97 = scmp.ne.s32.totalorder %s82, %s96
      %p98 = scmp.eq.s32.totalorder %s30, 0
      %p99 = por %p97, %p98
      %p100 = scmp.le.s32.totalorder 1, %s24
      %p101 = scmp.lt.s32.totalorder %s24, 3
      %p102 = pnand %p100, %p101
      %p103 = pneg %p102
      // Predicated region
      $region9: #{tpu_custom_call.1} parent=5 // pred_check
        _
      $region10: #{tpu_custom_call.1} parent=5 // pred_check_branch
        %105 = sbr.rel (%p102) target = $region12
      $region11: #{tpu_custom_call.1} parent=5 // pred_region
        %s106 = ssub.s32 %s24, 1
        // Predicated region
        $region13: #{tpu_custom_call.1} parent=11 // pred_check
          %p107 = pneg %p45
        $region14: #{tpu_custom_call.1} parent=11 // pred_check_branch
          %109 = sbr.rel (%p107) target = $region16
        $region15: #{tpu_custom_call.1} parent=11 // pred_region
          %s111 = ssub.s32 1152, 1152
          %112 = vsyncadd [#allocation6], %s111
          %s113 = sshll.u32 [#allocation5], 4
          %s114 = int_to_ptr.vmem [resolvable:$true] %s113
          %119 = dma.hbm_to_vmem [thread:$0]  %s2, 1152, %s114, [#allocation6], 128, 128, 8
        $region16: #{tpu_custom_call.1} parent=11 // pred_fallthru
          _
      $region12: #{tpu_custom_call.1} parent=5 // pred_fallthru
        _
      %p120 = scmp.lt.s32.totalorder %s24, 2
      // Predicated region
      $region17: #{tpu_custom_call.1} parent=5 // pred_check
        %p121 = pneg %p120
      $region18: #{tpu_custom_call.1} parent=5 // pred_check_branch
        %123 = sbr.rel (%p121) target = $region20
      $region19: #{tpu_custom_call.1} parent=5 // pred_region
        _
      $region20: #{tpu_custom_call.1} parent=5 // pred_fallthru
        _
      %p124 = scmp.le.s32.totalorder 1, %s24
      %p125 = scmp.lt.s32.totalorder %s24, 3
      %p126 = pnand %p124, %p125
      %p127 = pneg %p126
      // Predicated region
      $region21: #{tpu_custom_call.1} parent=5 // pred_check
        _
      $region22: #{tpu_custom_call.1} parent=5 // pred_check_branch
        %129 = sbr.rel (%p126) target = $region24
      $region23: #{tpu_custom_call.1} parent=5 // pred_region
        %s130 = ssub.s32 %s24, 1
        // Predicated region
        $region25: #{tpu_custom_call.1} parent=23 // pred_check
          %p131 = pneg %p45
        $region26: #{tpu_custom_call.1} parent=23 // pred_check_branch
          %133 = sbr.rel (%p131) target = $region28
        $region27: #{tpu_custom_call.1} parent=23 // pred_region
          %134 = dma.done [#allocation6], 1152
        $region28: #{tpu_custom_call.1} parent=23 // pred_fallthru
          _
        %p135 = pneg %p45
        %p136 = pneg %p42
        %p137 = pneg %p71
        %p138 = pneg %p68
        %s139 = sand.u32 %s58, 1
        %s140 = scalar_lea.sflag [#allocation7], %s139
        %s141 = sand.u32 %s58, 1
        %s142 = smul.addr %s141, 8
        %s143 = scalar_lea.vmem [#allocation8], %s142
        %p144 = pneg %p92
        %p145 = pneg %p89
        %s146 = smul.u32 %s29, 8
        %s147 = sld [smem:[#allocation3 + %s146]]
        %p148 = scmp.gt.s32.totalorder %s147, 0
        %s149 = scalar_select %p148, %s147, 0
        %p150 = scmp.lt.s32.totalorder %s149, 64
        %s151 = scalar_select %p150, %s149, 64
        %s152 = scalar_lea.vmem [#allocation5], %s151
        %v153 = vld [vmem:[%s152] sm:$0x1]
        %154 = vst [vmem:[%s143] sm:$0x1] %v153
        %s155 = sadd.s32 %s146, 1
        %s156 = sld [smem:[#allocation3 + %s155]]
        %p157 = scmp.gt.s32.totalorder %s156, 0
        %s158 = scalar_select %p157, %s156, 0
        %p159 = scmp.lt.s32.totalorder %s158, 64
        %s160 = scalar_select %p159, %s158, 64
        %s161 = scalar_lea.vmem [#allocation5], %s160
        %v162 = vld [vmem:[%s161] sm:$0x1]
        %163 = vst [vmem:[%s143 + $0x1] sm:$0x1] %v162
        %s164 = sadd.s32 %s146, 2
        %s165 = sld [smem:[#allocation3 + %s164]]
        %p166 = scmp.gt.s32.totalorder %s165, 0
        %s167 = scalar_select %p166, %s165, 0
        %p168 = scmp.lt.s32.totalorder %s167, 64
        %s169 = scalar_select %p168, %s167, 64
        %s170 = scalar_lea.vmem [#allocation5], %s169
        %v171 = vld [vmem:[%s170] sm:$0x1]
        %172 = vst [vmem:[%s143 + $0x2] sm:$0x1] %v171
        %s173 = sadd.s32 %s146, 3
        %s174 = sld [smem:[#allocation3 + %s173]]
        %p175 = scmp.gt.s32.totalorder %s174, 0
        %s176 = scalar_select %p175, %s174, 0
        %p177 = scmp.lt.s32.totalorder %s176, 64
        %s178 = scalar_select %p177, %s176, 64
        %s179 = scalar_lea.vmem [#allocation5], %s178
        %v180 = vld [vmem:[%s179] sm:$0x1]
        %181 = vst [vmem:[%s143 + $0x3] sm:$0x1] %v180
        %s182 = sadd.s32 %s146, 4
        %s183 = sld [smem:[#allocation3 + %s182]]
        %p184 = scmp.gt.s32.totalorder %s183, 0
        %s185 = scalar_select %p184, %s183, 0
        %p186 = scmp.lt.s32.totalorder %s185, 64
        %s187 = scalar_select %p186, %s185, 64
        %s188 = scalar_lea.vmem [#allocation5], %s187
        %v189 = vld [vmem:[%s188] sm:$0x1]
        %190 = vst [vmem:[%s143 + $0x4] sm:$0x1] %v189
        %s191 = sadd.s32 %s146, 5
        %s192 = sld [smem:[#allocation3 + %s191]]
        %p193 = scmp.gt.s32.totalorder %s192, 0
        %s194 = scalar_select %p193, %s192, 0
        %p195 = scmp.lt.s32.totalorder %s194, 64
        %s196 = scalar_select %p195, %s194, 64
        %s197 = scalar_lea.vmem [#allocation5], %s196
        %v198 = vld [vmem:[%s197] sm:$0x1]
        %199 = vst [vmem:[%s143 + $0x5] sm:$0x1] %v198
        %s200 = sadd.s32 %s146, 6
        %s201 = sld [smem:[#allocation3 + %s200]]
        %p202 = scmp.gt.s32.totalorder %s201, 0
        %s203 = scalar_select %p202, %s201, 0
        %p204 = scmp.lt.s32.totalorder %s203, 64
        %s205 = scalar_select %p204, %s203, 64
        %s206 = scalar_lea.vmem [#allocation5], %s205
        %v207 = vld [vmem:[%s206] sm:$0x1]
        %208 = vst [vmem:[%s143 + $0x6] sm:$0x1] %v207
        %s209 = sadd.s32 %s146, 7
        %s210 = sld [smem:[#allocation3 + %s209]]
        %p211 = scmp.gt.s32.totalorder %s210, 0
        %s212 = scalar_select %p211, %s210, 0
        %p213 = scmp.lt.s32.totalorder %s212, 64
        %s214 = scalar_select %p213, %s212, 64
        %s215 = scalar_lea.vmem [#allocation5], %s214
        %v216 = vld [vmem:[%s215] sm:$0x1]
        %217 = vst [vmem:[%s143 + $0x7] sm:$0x1] %v216
        %v218 = vld [vmem:[%s143] sm:$0xff]
        %v219 = vlaneseq
        %v220 = vshrl.u32 %v219, 7
        %vm221 = vcmp.eq.s32.totalorder %v220, 0
        %s222 = sld [smem:[#allocation4 + %s146]]
        %v223 = vstv %s222
        %v224 = vsel %vm221, %v223, 0
        %vm225 = vcmp.eq.s32.totalorder %v220, 1
        %s226 = sld [smem:[#allocation4 + %s155]]
        %v227 = vstv %s226
        %v228 = vsel %vm225, %v227, 0
        %v229 = vadd.s32 %v224, %v228
        %vm230 = vcmp.eq.s32.totalorder %v220, 2
        %s231 = sld [smem:[#allocation4 + %s164]]
        %v232 = vstv %s231
        %v233 = vsel %vm230, %v232, 0
        %v234 = vadd.s32 %v229, %v233
        %vm235 = vcmp.eq.s32.totalorder %v220, 3
        %s236 = sld [smem:[#allocation4 + %s173]]
        %v237 = vstv %s236
        %v238 = vsel %vm235, %v237, 0
        %v239 = vadd.s32 %v234, %v238
        %vm240 = vcmp.eq.s32.totalorder %v220, 4
        %s241 = sld [smem:[#allocation4 + %s182]]
        %v242 = vstv %s241
        %v243 = vsel %vm240, %v242, 0
        %v244 = vadd.s32 %v239, %v243
        %vm245 = vcmp.eq.s32.totalorder %v220, 5
        %s246 = sld [smem:[#allocation4 + %s191]]
        %v247 = vstv %s246
        %v248 = vsel %vm245, %v247, 0
        %v249 = vadd.s32 %v244, %v248
        %vm250 = vcmp.eq.s32.totalorder %v220, 6
        %s251 = sld [smem:[#allocation4 + %s200]]
        %v252 = vstv %s251
        %v253 = vsel %vm250, %v252, 0
        %v254 = vadd.s32 %v249, %v253
        %vm255 = vcmp.eq.s32.totalorder %v220, 7
        %s256 = sld [smem:[#allocation4 + %s209]]
        %v257 = vstv %s256
        %v258 = vsel %vm255, %v257, 0
        %v259 = vadd.s32 %v254, %v258
        %260 = vmax.xlane.f32.xlu0 %v218
        %v261 = vpop.xlane.xlu0 %260
        %v262 = vsub.f32 %v218, %v261
        %v263 = vmul.f32 %v262, 1.442695
        %v264 = vpow.pop %v263
        %265 = vadd.xlane.f32.xlu0 %v264
        %v266 = vpop.xlane.xlu0 %265
        %v267 = vlog2.pop %v266
        %v268 = vmul.f32 %v267, 0.6931472
        %v269 = vadd.f32 %v261, %v268
        %v270 = vlaneseq
        %v271 = vand.u32 %v270, 127
        %vm272 = vcmp.eq.s32.totalorder %v271, %v259
        %v273 = vsel %vm272, %v218, 0.0
        %274 = vadd.xlane.f32.xlu0 %v273
        %v275 = vpop.xlane.xlu0 %274
        %v276 = vstv %s146
        %v277 = vadd.s32 %v276, %v220
        %vm278 = vcmp.lt.s32.totalorder %v277, 16
        %v279 = vsub.f32 %v269, %v275
        %v280 = vsel %vm278, %v279, 0.0
        %v281 = vrot.slane %v280, 4
        %v282 = vadd.f32 %v280, %v281
        %v283 = vrot.slane %v282, 2
        %v284 = vadd.f32 %v282, %v283
        %v285 = vrot.slane %v284, 1
        %v286 = vadd.f32 %v284, %v285
        %p287 = scmp.eq.s32.totalorder %s29, 0
        // Predicated region
        $region29: #{tpu_custom_call.1} parent=23 // pred_check
          %p288 = pneg %p287
        $region30: #{tpu_custom_call.1} parent=23 // pred_check_branch
          %290 = sbr.rel (%p288) target = $region32
        $region31: #{tpu_custom_call.1} parent=23 // pred_region
          %vm291 = vcmask 0
          %292 = vst.msk [vmem:[#allocation9] sm:$0x1] %vm291, 0.0
        $region32: #{tpu_custom_call.1} parent=23 // pred_fallthru
          _
        %v293 = vld [vmem:[#allocation9] sm:$0x1]
        %v294 = vadd.f32 %v293, %v286
        %vm295 = vcmask 0
        %296 = vst.msk [vmem:[#allocation9] sm:$0x1] %vm295, %v294
        %p297 = scmp.eq.s32.totalorder %s29, 1
        // Predicated region
        $region33: #{tpu_custom_call.1} parent=23 // pred_check
          %p298 = pneg %p297
        $region34: #{tpu_custom_call.1} parent=23 // pred_check_branch
          %300 = sbr.rel (%p298) target = $region36
        $region35: #{tpu_custom_call.1} parent=23 // pred_region
          %v301 = vld [vmem:[#allocation9] sm:$0x1]
          %v302 = vmul.f32 %v301, 0.0625
          %303 = vst.msk [vmem:[#allocation9] sm:$0x1] %vm295, %v302
        $region36: #{tpu_custom_call.1} parent=23 // pred_fallthru
          _
        %s304 = sand.u32 %s58, 1
        %s305 = scalar_lea.sflag [#allocation7], %s304
        %s306 = sand.u32 %s58, 1
        %s307 = smul.addr %s306, 8
        %s308 = scalar_lea.vmem [#allocation8], %s307
        // Predicated region
        $region37: #{tpu_custom_call.1} parent=23 // pred_check
          %p309 = pneg %p68
        $region38: #{tpu_custom_call.1} parent=23 // pred_check_branch
          %311 = sbr.rel (%p309) target = $region40
        $region39: #{tpu_custom_call.1} parent=23 // pred_region
          %s313 = ssub.s32 128, 128
          %314 = vsyncadd %s305, %s313
          %s315 = smul.addr %s29, 128
          %s316 = scalar_lea.hbm %s3, %s315
          %s318 = sshll.u32 %s308, 4
          %s319 = int_to_ptr.vmem [resolvable:$true] %s318
          %321 = dma.vmem_to_hbm [thread:$0]  %s319, 128, %s316, %s305
        $region40: #{tpu_custom_call.1} parent=23 // pred_fallthru
          _
        // Predicated region
        $region41: #{tpu_custom_call.1} parent=23 // pred_check
          %p322 = pneg %p89
        $region42: #{tpu_custom_call.1} parent=23 // pred_check_branch
          %324 = sbr.rel (%p322) target = $region44
        $region43: #{tpu_custom_call.1} parent=23 // pred_region
          %s326 = ssub.s32 16, 16
          %327 = vsyncadd [#allocation10], %s326
          %s329 = sshll.u32 [#allocation9], 4
          %s330 = int_to_ptr.vmem [resolvable:$true] %s329
          %332 = dma.vmem_to_hbm [thread:$0]  %s330, 16, %s4, [#allocation10]
        $region44: #{tpu_custom_call.1} parent=23 // pred_fallthru
          _
        // Predicated region
        $region45: #{tpu_custom_call.1} parent=23 // pred_check
          %p333 = pneg %p89
        $region46: #{tpu_custom_call.1} parent=23 // pred_check_branch
          %335 = sbr.rel (%p333) target = $region48
        $region47: #{tpu_custom_call.1} parent=23 // pred_region
          %336 = dma.done [#allocation10], 16
        $region48: #{tpu_custom_call.1} parent=23 // pred_fallthru
          _
      $region24: #{tpu_custom_call.1} parent=5 // pred_fallthru
        _
      %p337 = scmp.le.s32.totalorder 2, %s24
      // Predicated region
      $region49: #{tpu_custom_call.1} parent=5 // pred_check
        %p338 = pneg %p337
      $region50: #{tpu_custom_call.1} parent=5 // pred_check_branch
        %340 = sbr.rel (%p338) target = $region52
      $region51: #{tpu_custom_call.1} parent=5 // pred_region
        %s341 = ssub.s32 %s24, 2
        // Predicated region
        $region53: #{tpu_custom_call.1} parent=51 // pred_check
          %p342 = pneg %p74
        $region54: #{tpu_custom_call.1} parent=51 // pred_check_branch
          %344 = sbr.rel (%p342) target = $region56
        $region55: #{tpu_custom_call.1} parent=51 // pred_region
          %s345 = sand.u32 %s59, 1
          %s346 = scalar_lea.sflag [#allocation7], %s345
          %s347 = sand.u32 %s59, 1
          %s348 = smul.addr %s347, 8
          %s349 = scalar_lea.vmem [#allocation8], %s348
          %350 = dma.done %s346, 128
        $region56: #{tpu_custom_call.1} parent=51 // pred_fallthru
          _
      $region52: #{tpu_custom_call.1} parent=5 // pred_fallthru
        _
    $region6: #{tpu_custom_call.1} parent=1 // loop_footer
      %s28 = sadd.s32 1, %s24
    $region7: #{tpu_custom_call.1} parent=1 // loop_footer_branch
      %23 = sbr.rel target = $region3
    $region8: #{tpu_custom_call.1} parent=1 // loop_exit
      _
    %351 = vsyncpa [#allocation6], 1
    %s352 = scalar_lea.sflag [#allocation6], 1
    %353 = vsyncpa %s352, 1
    %354 = vsyncpa [#allocation7], 1
    %s355 = scalar_lea.sflag [#allocation7], 1
    %356 = vsyncpa %s355, 1
    %357 = vsyncpa [#allocation10], 1

</llo_original>
